<compile_context>
chip_gen: v7x
topology: tpu7x:2x2x1
jax: 0.10.0
libtpu: 0.0.40
codegen_flags: <defaults>
</compile_context>

<pallas_src>
import functools

import jax
import jax.numpy as jnp
from jax.experimental import pallas as pl
from jax.experimental.pallas import tpu as pltpu


_LANE = 128            # lane width / lane-dense granule
_TARGET_BLOCK_C = 512  # class-tile target when the head must be N-tiled
_MAX_BLOCK_B = 1024    # batch-tile cap
_MIB = 1024 * 1024


def _round_up(x, m):
    return (x + m - 1) // m * m


# ----------------------------------------------------------------------------
# Per-generation hardware policy
# ----------------------------------------------------------------------------
@functools.lru_cache(maxsize=None)
def _tpu_generation():
    try:
        kind = jax.devices()[0].device_kind.lower()
    except Exception:
        return "unknown"
    if "v7" in kind:
        return "v7x"
    if "v6" in kind:
        return "v6e"
    if "v5" in kind:
        return "v5e"
    return "unknown"


@functools.lru_cache(maxsize=None)
def _vmem_physical_bytes():
    try:  # preferred: ask the hardware
        vm = int(getattr(pltpu.get_tpu_info(), "vmem_capacity_bytes", 0) or 0)
        if vm > 0:
            return vm
    except Exception:
        pass
    return {"v5e": 128, "v6e": 128, "v7x": 64}.get(_tpu_generation(), 64) * _MIB


def _vmem_limit_bytes():
    """CompilerParams vmem limit: ~96 MiB on 128-MiB parts, ~48 MiB on v7x."""
    phys = max(_vmem_physical_bytes(), 64 * _MIB)
    return max(32 * _MIB, min(phys - 16 * _MIB, phys * 3 // 4))


def _default_vmem_budget():
    """Tile working-set budget (headroom under the scoped limit)."""
    return _vmem_limit_bytes() * 2 // 3


def _mxu_align():
    # v5e MXU is 4x128x128; v6e/v7x are 2x256x256.
    return 128 if _tpu_generation() == "v5e" else 256


# ----------------------------------------------------------------------------
# Static tiling plan (depends only on F, C, compute dtype and the VMEM budget)
# ----------------------------------------------------------------------------
def _plan_tiles(F, C, w_itemsize, budget):
    """Returns dict(block_f, F_pad, k_tiles, block_c, C_pad, c_tiles)."""
    c_pad128 = _round_up(C, _LANE)

    # Whole weight resident (single-buffered, DMA'd exactly once per call).
    if F * c_pad128 * w_itemsize <= budget // 2:
        return dict(block_f=F, F_pad=F, k_tiles=1,
                    block_c=c_pad128, C_pad=c_pad128, c_tiles=1)

    # Tile the class dim (lane-dense multiple of 128).
    block_c = min(c_pad128, _TARGET_BLOCK_C)
    C_pad = _round_up(C, block_c)
    c_tiles = C_pad // block_c

    # Whole F in one K tile if the (double-buffered) weight tile still fits.
    if F <= _LANE or 2 * F * block_c * w_itemsize <= budget // 3:
        return dict(block_f=F, F_pad=F, k_tiles=1,
                    block_c=block_c, C_pad=C_pad, c_tiles=c_tiles)

    # K tiling: block_f must be a multiple of 128 (activation lane dim);
    # prefer a divisor of F_pad so the activation never needs padding.
    F_pad = _round_up(F, _LANE)
    max_bf = (budget // 3) // (2 * block_c * w_itemsize)
    max_bf = max(_LANE, min(F_pad, max_bf // _LANE * _LANE))
    block_f = _LANE  # 128 always divides F_pad
    for cand in range(max_bf, _LANE - 1, -_LANE):
        if F_pad % cand == 0:
            block_f = cand
            break
    k_tiles = F_pad // block_f
    return dict(block_f=block_f, F_pad=F_pad, k_tiles=k_tiles,
                block_c=block_c, C_pad=C_pad, c_tiles=c_tiles)


def _pick_block_b(B, plan, x_itemsize, w_itemsize, out_itemsize, budget):
    """Largest MXU-aligned batch tile whose working set fits the budget."""
    align = _mxu_align()
    if B <= align:
        return B  # a full-dim block is always layout-legal

    block_f, block_c = plan["block_f"], plan["block_c"]
    k_tiles, c_tiles = plan["k_tiles"], plan["c_tiles"]
    w_bufs = 1 if (k_tiles == 1 and c_tiles == 1) else 2   # resident weight
    b_bufs = 1 if c_tiles == 1 else 2                      # resident bias
    fixed = w_bufs * block_f * block_c * w_itemsize + b_bufs * block_c * 4
    per_row = 2 * block_f * x_itemsize + 2 * block_c * out_itemsize
    if k_tiles > 1:
        per_row += block_c * 4                              # f32 accumulator

    bb = min(_MAX_BLOCK_B, _round_up(B, align))
    if _tpu_generation() == "v7x" and c_tiles == 1:
        # Guarantee >= 2 tiles on the parallel batch axis so both TCs work.
        bb = min(bb, _round_up((B + 1) // 2, align))
    while bb > align and fixed + bb * per_row > budget:
        bb //= 2
    return max(align, bb // align * align)


# ----------------------------------------------------------------------------
# Parameter prep (one-time, hoisted out of the per-step kernel)
# ----------------------------------------------------------------------------
def prepare_linear_params(weight, bias, compute_dtype=jnp.float32,
                          vmem_budget=None):
    """W[C,F] -> W^T[F_pad, C_pad] (lane-dense, zero-padded); bias -> f32 [1, C_pad]."""
    C, F = weight.shape
    budget = int(vmem_budget) if vmem_budget else _default_vmem_budget()
    plan = _plan_tiles(F, C, jnp.dtype(compute_dtype).itemsize, budget)
    F_pad, C_pad = plan["F_pad"], plan["C_pad"]
    w_t = jnp.zeros((F_pad, C_pad), compute_dtype)
    w_t = w_t.at[:F, :C].set(weight.T.astype(compute_dtype))
    bias2d = jnp.zeros((1, C_pad), jnp.float32)
    bias2d = bias2d.at[0, :C].set(bias.astype(jnp.float32))
    return w_t, bias2d


# ----------------------------------------------------------------------------
# Kernels
# ----------------------------------------------------------------------------
def _linear_kernel_single_k(x_ref, w_ref, b_ref, o_ref, *, precision):
    # Single K tile: matmul + bias straight to the output block (no scratch).
    x = x_ref[...].astype(w_ref.dtype)          # in-kernel cast (no HBM round trip)
    acc = jax.lax.dot_general(
        x, w_ref[...], dimension_numbers=(((1,), (0,)), ((), ())),
        preferred_element_type=jnp.float32, precision=precision)
    o_ref[...] = (acc + b_ref[...]).astype(o_ref.dtype)


def _linear_kernel_k_tiled(x_ref, w_ref, b_ref, o_ref, acc_ref, *, precision):
    # K (feature) axis is the innermost grid dim; accumulate in f32 scratch.
    k = pl.program_id(2)

    @pl.when(k == 0)
    def _init():
        acc_ref[...] = jnp.zeros_like(acc_ref)

    x = x_ref[...].astype(w_ref.dtype)
    acc_ref[...] += jax.lax.dot_general(
        x, w_ref[...], dimension_numbers=(((1,), (0,)), ((), ())),
        preferred_element_type=jnp.float32, precision=precision)

    @pl.when(k == pl.num_programs(2) - 1)
    def _finalize():
        o_ref[...] = (acc_ref[...] + b_ref[...]).astype(o_ref.dtype)


# ----------------------------------------------------------------------------
# Wrapper
# ----------------------------------------------------------------------------
@functools.partial(
    jax.jit,
    static_argnames=("num_classes", "out_dtype", "precision", "vmem_budget"))
def pallas_linear(feature, w_t, bias2d, *, num_classes, out_dtype,
                  precision=None, vmem_budget=None):
    """out = feature @ W.T + b, with W pre-transposed/padded by prepare_linear_params."""
    lead = feature.shape[:-1]
    F = feature.shape[-1]
    x = feature.reshape(-1, F)
    B = x.shape[0]

    budget = int(vmem_budget) if vmem_budget else _default_vmem_budget()
    w_itemsize = jnp.dtype(w_t.dtype).itemsize
    plan = _plan_tiles(F, num_classes, w_itemsize, budget)
    block_f, F_pad, k_tiles = plan["block_f"], plan["F_pad"], plan["k_tiles"]
    block_c, C_pad, c_tiles = plan["block_c"], plan["C_pad"], plan["c_tiles"]
    assert w_t.shape == (F_pad, C_pad), (
        "weight was prepared with a different plan/budget than this call")
    assert bias2d.shape == (1, C_pad)

    # Only pad the activation when F is K-tiled and not 128-divisible (rare);
    # otherwise it streams straight from HBM and is cast inside the kernel.
    if F_pad != F:
        x = jnp.pad(x, ((0, 0), (0, F_pad - F)))

    x_itemsize = jnp.dtype(x.dtype).itemsize
    out_itemsize = jnp.dtype(out_dtype).itemsize
    block_b = _pick_block_b(B, plan, x_itemsize, w_itemsize, out_itemsize, budget)
    b_tiles = pl.cdiv(B, block_b)

    # Blocks whose index never changes across the grid are single-buffered
    # (resident: DMA'd exactly once, no 2x VMEM tax).
    w_resident = (k_tiles == 1 and c_tiles == 1)
    b_resident = (c_tiles == 1)
    x_resident = (k_tiles == 1 and b_tiles == 1)

    def _spec(shape, index_map, resident):
        if resident:
            return pl.BlockSpec(shape, index_map, pipeline_mode=pl.Buffered(1))
        return pl.BlockSpec(shape, index_map)

    if k_tiles == 1:
        grid = (b_tiles, c_tiles)
        in_specs = [
            _spec((block_b, block_f), lambda i, j: (i, 0), x_resident),
            _spec((block_f, block_c), lambda i, j: (0, j), w_resident),
            _spec((1, block_c), lambda i, j: (0, j), b_resident),
        ]
        out_spec = pl.BlockSpec((block_b, block_c), lambda i, j: (i, j))
        scratch = []
        semantics = ("parallel", "parallel")
        kernel = functools.partial(_linear_kernel_single_k, precision=precision)
    else:
        grid = (b_tiles, c_tiles, k_tiles)        # reduction axis innermost
        in_specs = [
            pl.BlockSpec((block_b, block_f), lambda i, j, k: (i, k)),
            pl.BlockSpec((block_f, block_c), lambda i, j, k: (k, j)),
            _spec((1, block_c), lambda i, j, k: (0, j), b_resident),
        ]
        out_spec = pl.BlockSpec((block_b, block_c), lambda i, j, k: (i, j))
        scratch = [pltpu.VMEM((block_b, block_c), jnp.float32)]
        semantics = ("parallel", "parallel", "arbitrary")
        kernel = functools.partial(_linear_kernel_k_tiled, precision=precision)

    cost = pl.CostEstimate(
        flops=2 * B * F_pad * C_pad,
        transcendentals=0,
        bytes_accessed=(B * F_pad * x_itemsize
                        + (1 if w_resident else b_tiles) * F_pad * C_pad * w_itemsize
                        + C_pad * 4
                        + B * C_pad * out_itemsize))

    out_padded = pl.pallas_call(
        kernel,
        out_shape=jax.ShapeDtypeStruct((B, C_pad), out_dtype),
        grid_spec=pltpu.PrefetchScalarGridSpec(
            num_scalar_prefetch=0,
            grid=grid,
            in_specs=in_specs,
            out_specs=out_spec,
            scratch_shapes=scratch,
        ),
        compiler_params=pltpu.CompilerParams(
            dimension_semantics=semantics,
            vmem_limit_bytes=_vmem_limit_bytes(),
        ),
        cost_estimate=cost,
    )(x, w_t, bias2d)

    # Lane-dense padded stores stay inside the kernel; the trailing slice is
    # only paid when num_classes is not already a multiple of the tile width.
    # TODO(synk): expose a return_padded=True path so downstream consumers can
    # mask the padded logits and skip this extra HBM round trip.
    out = out_padded if C_pad == num_classes else out_padded[:, :num_classes]
    return out.reshape(*lead, num_classes)


class LinearModel:
    """JAX/Pallas port of the PyTorch LinearModel (backbone -> nn.Linear)."""

    def __init__(self, backbone, feature_dim, num_classes, key,
                 compute_dtype=jnp.float32, precision=None, vmem_budget=None):
        self.backbone = backbone
        self.feature_dim = feature_dim
        self.num_classes = num_classes
        self.precision = precision          # e.g. jax.lax.Precision.HIGHEST for exact f32
        self.vmem_budget = vmem_budget      # None -> per-generation auto budget
        kw, kb = jax.random.split(key)
        bound = 1.0 / (feature_dim ** 0.5)  # nn.Linear default uniform init
        self.weight = jax.random.uniform(
            kw, (num_classes, feature_dim), jnp.float32, -bound, bound)
        self.bias = jax.random.uniform(
            kb, (num_classes,), jnp.float32, -bound, bound)
        # One-time transpose + lane padding + f32 bias cast (hoisted out of the kernel).
        self.w_t, self.bias2d = prepare_linear_params(
            self.weight, self.bias, compute_dtype, vmem_budget)

    def __call__(self, x, req_feat=False):
        feature = self.backbone(x)
        out = pallas_linear(feature, self.w_t, self.bias2d,
                            num_classes=self.num_classes,
                            out_dtype=feature.dtype,
                            precision=self.precision,
                            vmem_budget=self.vmem_budget)
        if req_feat:
            return (feature, out)
        return out

    def update_encoder(self, backbone):
        self.backbone = backbone


if __name__ == "__main__":
    key = jax.random.PRNGKey(0)
    k_in, k_model, k_in2, k_model2 = jax.random.split(key, 4)

    # TODO(synk): the PyTorch backbone is an arbitrary injected module; using
    # identity here since its architecture is not specified.
    backbone = lambda x: x

    # --- small f32 path (resident-weight, single-K kernel) -------------------
    batch, feature_dim, num_classes = 8, 32, 16
    x = jax.random.normal(k_in, (batch, feature_dim), jnp.float32)
    model = LinearModel(backbone, feature_dim, num_classes, k_model)
    out = model(x)
    feat, out2 = model(x, req_feat=True)
    jax.block_until_ready((out, feat, out2))

    ref = x @ model.weight.T + model.bias
    assert out.shape == (batch, num_classes)
    assert jnp.allclose(out, ref, atol=1e-5, rtol=1e-5)
    assert jnp.allclose(out2, ref, atol=1e-5, rtol=1e-5)
    assert jnp.allclose(feat, x)

    # --- bf16 MXU-feed path (valid on v5e/v6e/v7x; f32 accumulation) ---------
    model_bf16 = LinearModel(backbone, feature_dim, num_classes, k_model,
                             compute_dtype=jnp.bfloat16)
    out_bf16 = jax.block_until_ready(model_bf16(x))
    assert out_bf16.shape == (batch, num_classes)
    assert jnp.allclose(out_bf16, ref, atol=2e-2, rtol=2e-2)

    # --- tiled path: a tiny VMEM budget forces class (N) and feature (K)
    #     tiling so the accumulator kernel variant is exercised at small
    #     shapes (production uses the per-generation auto budget) ------------
    B2, F2, C2 = 384, 256, 520
    x2 = jax.random.normal(k_in2, (B2, F2), jnp.float32)
    model_tiled = LinearModel(backbone, F2, C2, k_model2,
                              vmem_budget=256 * 1024)
    out_tiled = jax.block_until_ready(model_tiled(x2))
    ref_tiled = x2 @ model_tiled.weight.T + model_tiled.bias
    assert out_tiled.shape == (B2, C2)
    # Tolerant of MXU default-precision pass differences vs the XLA reference.
    assert jnp.allclose(out_tiled, ref_tiled, atol=2e-2, rtol=2e-2)

    print("KERNEL_OK")
</pallas_src>

<mosaic_0001>
module attributes {stable_mosaic.version = 11 : i64} {
  func.func @_linear_kernel_single_k(%arg0: i32, %arg1: i32, %arg2: memref<8x32xf32, #tpu.memory_space<vmem>>, %arg3: memref<32x128xf32, #tpu.memory_space<vmem>>, %arg4: memref<1x128xf32, #tpu.memory_space<vmem>>, %arg5: memref<8x128xf32, #tpu.memory_space<vmem>>) attributes {dimension_semantics = [#tpu.dimension_semantics<parallel>, #tpu.dimension_semantics<parallel>], iteration_bounds = array<i64: 1, 1>, scalar_prefetch = 0 : i64, scratch_operands = 0 : i64, tpu.core_type = #tpu.core_type<tc>, window_params = [{pipeline_mode = #tpu.pipeline_mode<synchronous>, transform_indices = @transform_0, window_bounds = array<i64: 8, 32>}, {pipeline_mode = #tpu.pipeline_mode<synchronous>, transform_indices = @transform_1, window_bounds = array<i64: 32, 128>}, {pipeline_mode = #tpu.pipeline_mode<synchronous>, transform_indices = @transform_2, window_bounds = array<i64: 1, 128>}, {transform_indices = @transform_3, window_bounds = array<i64: 8, 128>}]} {
    %c0 = arith.constant 0 : index
    %c0_0 = arith.constant 0 : index
    %0 = vector.load %arg2[%c0, %c0_0] : memref<8x32xf32, #tpu.memory_space<vmem>>, vector<8x32xf32>
    %c0_1 = arith.constant 0 : index
    %c0_2 = arith.constant 0 : index
    %1 = vector.load %arg3[%c0_1, %c0_2] : memref<32x128xf32, #tpu.memory_space<vmem>>, vector<32x128xf32>
    %cst = arith.constant dense<0.000000e+00> : vector<8x128xf32>
    %2 = tpu.matmul %0, %1, %cst {dimension_numbers = #tpu.dot_dimension_numbers<[1], [0], [0], [1], [0, 0, 1, 1], [], []>} : vector<8x32xf32>, vector<32x128xf32>, vector<8x128xf32> -> vector<8x128xf32>
    %c0_3 = arith.constant 0 : index
    %c0_4 = arith.constant 0 : index
    %3 = vector.load %arg4[%c0_3, %c0_4] : memref<1x128xf32, #tpu.memory_space<vmem>>, vector<1x128xf32>
    %4 = vector.broadcast %3 : vector<1x128xf32> to vector<8x128xf32>
    %5 = arith.addf %2, %4 : vector<8x128xf32>
    %c0_5 = arith.constant 0 : index
    %c0_6 = arith.constant 0 : index
    %6 = vector.load %arg5[%c0_5, %c0_6] : memref<8x128xf32, #tpu.memory_space<vmem>>, vector<8x128xf32>
    tpu.vector_store %arg5[%c0_5, %c0_6], %5 {strides = array<i32>} : memref<8x128xf32, #tpu.memory_space<vmem>>, vector<8x128xf32>,
    return
  }
  func.func @transform_0(%arg0: i32, %arg1: i32) -> (i32, i32) {
    %c0_i32 = arith.constant 0 : i32
    %c0_i32_0 = arith.constant 0 : i32
    return %arg0, %c0_i32 : i32, i32
  }
  func.func @transform_1(%arg0: i32, %arg1: i32) -> (i32, i32) {
    %c0_i32 = arith.constant 0 : i32
    %c0_i32_0 = arith.constant 0 : i32
    return %c0_i32, %arg1 : i32, i32
  }
  func.func @transform_2(%arg0: i32, %arg1: i32) -> (i32, i32) {
    %c0_i32 = arith.constant 0 : i32
    %c0_i32_0 = arith.constant 0 : i32
    return %c0_i32, %arg1 : i32, i32
  }
  func.func @transform_3(%arg0: i32, %arg1: i32) -> (i32, i32) {
    %c0_i32 = arith.constant 0 : i32
    return %arg0, %arg1 : i32, i32
  }
}

</mosaic_0001>

<llo_original>
// kernel: pallas_linear.1
$region0: #{pallas_linear.1}
  #allocation0 [shape = 'u32[]', space=smem, size = 0x4, offset = 0x4, fixed_abs, tag = 'smem constant byte address 0x4 - core index']
  #allocation1 [shape = 'u32[144,128]{1,0:T(1,128)}', space=vmem, size = 0x12000, scoped, tag = 'internal scratch']
  %s0 = inlined_call_operand.hbm [shape: f32[8,32], index: 0, kind: input, shape index: {}]
  %s1 = inlined_call_operand.hbm [shape: f32[32,128], index: 1, kind: input, shape index: {}]
  %s2 = inlined_call_operand.vmem [shape: f32[1,128], index: 2, kind: input, shape index: {}]
  %s3 = inlined_call_operand.hbm [shape: f32[8,128], index: 3, kind: output, shape index: {}]
  %s4 = sld [smem:[#allocation0]]
  $region30: #{pallas_linear.1} parent=0
    _
  %s6 = ssub.s32 1, %s4
  %s7 = scalar_select 0, %s6, %s4
  $region1: #{pallas_linear.1} parent=0
    #allocation2 [shape = 'u8[4096]{0}', space=vmem, size = 0x1000, scoped, tag = 'input window, operand 0, single buffered']
    #allocation3 [shape = 's32[1]{0}', space=sflag, size = 0x4, scoped, tag = 'scoped memory for pallas_linear.1']
    #allocation4 [shape = 's32[1]{0}', space=sflag, size = 0x4, scoped, tag = 'scoped memory for pallas_linear.1']
    #allocation5 [shape = 'u8[16384]{0}', space=vmem, size = 0x4000, scoped, tag = 'input window, operand 1, single buffered']
    #allocation6 [shape = 's32[1]{0}', space=sflag, size = 0x4, scoped, tag = 'scoped memory for pallas_linear.1']
    #allocation7 [shape = 'u8[4096]{0}', space=vmem, size = 0x1000, scoped, tag = 'output window, operand 0, single buffered']
    %8 = vsyncpa [#allocation3], 0
    %9 = vsyncpa [#allocation6], 0
    %10 = vsyncpa [#allocation4], 0
    // Predicated region
    $region2: #{pallas_linear.1} parent=1 // pred_check
      _
    $region3: #{pallas_linear.1} parent=1 // pred_check_branch
      %12 = sbr.rel (0) target = $region5
    $region4: #{pallas_linear.1} parent=1 // pred_region
      %s14 = ssub.s32 128, 128
      %15 = vsyncadd [#allocation3], %s14
      %s17 = sshll.u32 [#allocation2], 4
      %s18 = int_to_ptr.vmem [resolvable:$true] %s17
      %20 = dma.hbm_to_vmem [thread:$0]  %s0, 128, %s18, [#allocation3]
    $region5: #{pallas_linear.1} parent=1 // pred_fallthru
      _
    // Predicated region
    $region6: #{pallas_linear.1} parent=1 // pred_check
      _
    $region7: #{pallas_linear.1} parent=1 // pred_check_branch
      %22 = sbr.rel (0) target = $region9
    $region8: #{pallas_linear.1} parent=1 // pred_region
      %s24 = ssub.s32 512, 512
      %25 = vsyncadd [#allocation6], %s24
      %s26 = sshll.u32 [#allocation5], 4
      %s27 = int_to_ptr.vmem [resolvable:$true] %s26
      %32 = dma.hbm_to_vmem [thread:$0]  %s1, 512, %s27, [#allocation6], 128, 128, 8
    $region9: #{pallas_linear.1} parent=1 // pred_fallthru
      _
    // Predicated region
    $region10: #{pallas_linear.1} parent=1 // pred_check
      _
    $region11: #{pallas_linear.1} parent=1 // pred_check_branch
      %34 = sbr.rel (0) target = $region13
    $region12: #{pallas_linear.1} parent=1 // pred_region
      _
    $region13: #{pallas_linear.1} parent=1 // pred_fallthru
      _
    // Predicated region
    $region14: #{pallas_linear.1} parent=1 // pred_check
      _
    $region15: #{pallas_linear.1} parent=1 // pred_check_branch
      %36 = sbr.rel (0) target = $region17
    $region16: #{pallas_linear.1} parent=1 // pred_region
      %37 = dma.done [#allocation3], 128
    $region17: #{pallas_linear.1} parent=1 // pred_fallthru
      _
    // Predicated region
    $region18: #{pallas_linear.1} parent=1 // pred_check
      _
    $region19: #{pallas_linear.1} parent=1 // pred_check_branch
      %39 = sbr.rel (0) target = $region21
    $region20: #{pallas_linear.1} parent=1 // pred_region
      %40 = dma.done [#allocation6], 512
    $region21: #{pallas_linear.1} parent=1 // pred_fallthru
      _
    %v41 = vld [vmem:[#allocation2] sm:$0xff]
    %v42 = vld [vmem:[#allocation5] sm:$0xff]
    %v43 = vld [vmem:[#allocation5 + $0x8] sm:$0xff]
    %v44 = vld [vmem:[#allocation5 + $0x10] sm:$0xff]
    %v45 = vld [vmem:[#allocation5 + $0x18] sm:$0xff]
    %v46 = vld [vmem:[%s2] sm:$0x1]
    %v48 = vlaneseq
    %v49 = vshrl.u32 %v48, 7
    %v50 = vsub.s32 0, %v49
    %v51 = vrot.slane %v46, %v50
    %vm53 = vcmask 261120
    %v55 = vsel %vm53, %v41, 0
    %57 = vmatprep.subr.mxu0 0.0
    %58 = vmatpush1.msra.mxu0 %v42
    %59 = vmatprep.subr.mxu0 0.0
    %60 = vmatpush1.msra.mxu0 %v43
    %61 = vmatprep.subr.mxu0 0.0
    %62 = vmatpush1.msra.mxu0 %v44
    %63 = vmatprep.subr.mxu0 0.0
    %64 = vmatpush1.msra.mxu0 %v45
    %65 = vmatprep.subr.mxu0 0.0
    %66 = vmatpush1.msra.mxu0 0.0
    %67 = vmatprep.subr.mxu0 0.0
    %68 = vmatpush1.msra.mxu0 0.0
    %69 = vmatprep.subr.mxu0 0.0
    %70 = vmatpush1.msra.mxu0 0.0
    %71 = vmatprep.subr.mxu0 0.0
    %72 = vmatpush1.msra.mxu0 0.0
    %73 = vmatprep.subr.mxu0 0.0
    %74 = vmatpush1.msra.mxu0 0.0
    %75 = vmatprep.subr.mxu0 0.0
    %76 = vmatpush1.msra.mxu0 0.0
    %77 = vmatprep.subr.mxu0 0.0
    %78 = vmatpush1.msra.mxu0 0.0
    %79 = vmatprep.subr.mxu0 0.0
    %80 = vmatpush1.msra.mxu0 0.0
    %81 = vmatprep.subr.mxu0 0.0
    %82 = vmatpush1.msra.mxu0 0.0
    %83 = vmatprep.subr.mxu0 0.0
    %84 = vmatpush1.msra.mxu0 0.0
    %85 = vmatprep.subr.mxu0 0.0
    %86 = vmatpush1.msra.mxu0 0.0
    %87 = vmatprep.subr.mxu0 0.0
    %88 = vmatpush1.msra.mxu0 0.0
    %89 = vmatprep.subr.mxu0 0.0
    %90 = vmatpush1.msra.mxu0 0.0
    %91 = vmatprep.subr.mxu0 0.0
    %92 = vmatpush1.msra.mxu0 0.0
    %93 = vmatprep.subr.mxu0 0.0
    %94 = vmatpush1.msra.mxu0 0.0
    %95 = vmatprep.subr.mxu0 0.0
    %96 = vmatpush1.msra.mxu0 0.0
    %97 = vmatprep.subr.mxu0 0.0
    %98 = vmatpush1.msra.mxu0 0.0
    %99 = vmatprep.subr.mxu0 0.0
    %100 = vmatpush1.msra.mxu0 0.0
    %101 = vmatprep.subr.mxu0 0.0
    %102 = vmatpush1.msra.mxu0 0.0
    %103 = vmatprep.subr.mxu0 0.0
    %104 = vmatpush1.msra.mxu0 0.0
    %105 = vmatprep.subr.mxu0 0.0
    %106 = vmatpush1.msra.mxu0 0.0
    %107 = vmatprep.subr.mxu0 0.0
    %108 = vmatpush1.msra.mxu0 0.0
    %109 = vmatprep.subr.mxu0 0.0
    %110 = vmatpush1.msra.mxu0 0.0
    %111 = vmatprep.subr.mxu0 0.0
    %112 = vmatpush1.msra.mxu0 0.0
    %113 = vmatprep.subr.mxu0 0.0
    %114 = vmatpush1.msra.mxu0 0.0
    %115 = vmatprep.subr.mxu0 0.0
    %116 = vmatpush1.msra.mxu0 0.0
    %117 = vmatprep.subr.mxu0 0.0
    %118 = vmatpush1.msra.mxu0 0.0
    %119 = vmatprep.subr.mxu0 0.0
    %120 = vmatpush1.msra.mxu0 0.0
    %121 = vmatprep.mubr.f32.mxu0 0.0
    %122 = vmatmul.mubr.f32.gmra.mrb[0].mxu0 %v55
    %v123 = vpop.f32.mrb[0].mxu0
    %v124 = vadd.f32 %v51, %v123
    %v125 = vpop.f32.mrb[0].mxu0
    %126 = vdwg.mxu0
    %127 = vst [vmem:[#allocation7] sm:$0xff] %v124
    // Predicated region
    $region22: #{pallas_linear.1} parent=1 // pred_check
      _
    $region23: #{pallas_linear.1} parent=1 // pred_check_branch
      %129 = sbr.rel (0) target = $region25
    $region24: #{pallas_linear.1} parent=1 // pred_region
      %s131 = ssub.s32 128, 128
      %132 = vsyncadd [#allocation4], %s131
      %s134 = sshll.u32 [#allocation7], 4
      %s135 = int_to_ptr.vmem [resolvable:$true] %s134
      %137 = dma.vmem_to_hbm [thread:$0]  %s135, 128, %s3, [#allocation4]
    $region25: #{pallas_linear.1} parent=1 // pred_fallthru
      _
    // Predicated region
    $region26: #{pallas_linear.1} parent=1 // pred_check
      _
    $region27: #{pallas_linear.1} parent=1 // pred_check_branch
      %139 = sbr.rel (0) target = $region29
    $region28: #{pallas_linear.1} parent=1 // pred_region
      %140 = dma.done [#allocation4], 128
    $region29: #{pallas_linear.1} parent=1 // pred_fallthru
      _
    %141 = vsyncpa [#allocation3], 1
    %142 = vsyncpa [#allocation6], 1
    %143 = vsyncpa [#allocation4], 1

</llo_original>
